<compile_context>
chip_gen: v7x
topology: tpu7x:2x2x1
jax: 0.10.0
libtpu: 0.0.40
codegen_flags: <defaults>
</compile_context>

<pallas_src>
import functools

import jax
import jax.numpy as jnp
import numpy as np
from jax import lax
from jax.experimental import pallas as pl
from jax.experimental.pallas import tpu as pltpu


def _round_up(x, m):
    return (x + m - 1) // m * m


def _rnn_fused_kernel(x_ref, wih_ref, whh_ref, b_ref, wd_ref, bd_ref, h0_ref,
                      out_ref, state_ref, xp_sc, y_sc, *, T, B):
    """Single-invocation fused RNN forward.

    x_ref    : (T*B, D)      flattened sequence input
    wih_ref  : (D, H)        input->hidden weight (pre-transposed)
    whh_ref  : (H, H)        hidden->hidden weight (pre-transposed)
    b_ref    : (1, H)        b_ih + b_hh
    wd_ref   : (H, O_pad)    dense weight (pre-transposed, lane-padded)
    bd_ref   : (1, O_pad)    dense bias (lane-padded)
    h0_ref   : (B, H)        initial hidden state
    out_ref  : (T*B, O_pad)  dense output (lane-dense, padding sliced off outside)
    state_ref: (B, H)        final hidden state
    xp_sc    : (T*B, H) f32  scratch: precomputed input projection
    y_sc     : (T*B, H) f32  scratch: all hidden states (input to dense head)
    """
    # ---- Phase 1: batched input projection for the whole sequence (one big matmul)
    xp_sc[...] = (
        jnp.dot(x_ref[...], wih_ref[...], preferred_element_type=jnp.float32)
        + b_ref[...]
    )

    # Hoist loop-invariant loads.
    whh = whh_ref[...]
    h0 = h0_ref[...].astype(jnp.float32)

    # ---- Phase 2: serial recurrence (only the truly sequential work stays here)
    def step(t, h):
        row = pl.multiple_of(t * B, B)
        xp_t = xp_sc[pl.ds(row, B), :]                       # (B, H)
        h_new = jnp.tanh(
            xp_t + jnp.dot(h, whh, preferred_element_type=jnp.float32)
        )
        y_sc[pl.ds(row, B), :] = h_new
        return h_new

    h_last = lax.fori_loop(0, T, step, h0, unroll=True)

    # ---- Phase 3: batched dense head over all timesteps (one big matmul,
    #               lane-dense padded output)
    out_ref[...] = (
        jnp.dot(y_sc[...], wd_ref[...], preferred_element_type=jnp.float32)
        + bd_ref[...]
    ).astype(out_ref.dtype)
    state_ref[...] = h_last.astype(state_ref.dtype)


def rnn_forward(X, params, h0):
    """Mirrors RNN.forward: returns (output (T*B, O), state (1, B, H))."""
    T, B, D = X.shape
    W_ih, W_hh, b_ih, b_hh, W_d, b_d = (
        params["W_ih"], params["W_hh"], params["b_ih"], params["b_hh"],
        params["W_dense"], params["b_dense"],
    )
    H = W_hh.shape[0]
    O = W_d.shape[0]
    O_pad = _round_up(O, 128)            # lane-dense output (avoid masked stores)

    x_flat = X.reshape(T * B, D)         # flatten time into the row dim (free in XLA)
    wih_t = W_ih.T                       # (D, H)
    whh_t = W_hh.T                       # (H, H)
    b = (b_ih + b_hh).reshape(1, H)      # (1, H)
    wd_t_pad = jnp.zeros((H, O_pad), X.dtype).at[:, :O].set(W_d.T)   # (H, O_pad)
    bd_pad = jnp.zeros((1, O_pad), X.dtype).at[:, :O].set(b_d)       # (1, O_pad)

    flops = 2 * T * B * (D * H + H * H + H * O_pad)
    bytes_accessed = 4 * (
        x_flat.size + wih_t.size + whh_t.size + b.size + wd_t_pad.size
        + bd_pad.size + h0.size + T * B * O_pad + B * H
    )

    out_pad, state = pl.pallas_call(
        functools.partial(_rnn_fused_kernel, T=T, B=B),
        out_shape=(
            jax.ShapeDtypeStruct((T * B, O_pad), X.dtype),
            jax.ShapeDtypeStruct((B, H), X.dtype),
        ),
        scratch_shapes=[
            pltpu.VMEM((T * B, H), jnp.float32),   # Xp (input projection)
            pltpu.VMEM((T * B, H), jnp.float32),   # Y (all hidden states)
        ],
        cost_estimate=pl.CostEstimate(
            flops=flops,
            transcendentals=T * B * H,
            bytes_accessed=bytes_accessed,
        ),
    )(x_flat, wih_t, whh_t, b, wd_t_pad, bd_pad, h0)

    output = out_pad[:, :O]              # strip lane padding
    state = state.reshape(1, B, H)       # nn.RNN h_n shape (num_layers*dirs, B, H)
    return output, state


def _reference_forward(X, params, h0):
    """Plain-JAX reference (lax.scan) for correctness checking."""
    W_ih, W_hh, b_ih, b_hh, W_d, b_d = (
        params["W_ih"], params["W_hh"], params["b_ih"], params["b_hh"],
        params["W_dense"], params["b_dense"],
    )

    def step(h, x_t):
        h_new = jnp.tanh(x_t @ W_ih.T + b_ih + h @ W_hh.T + b_hh)
        return h_new, h_new

    h_last, Y = jax.lax.scan(step, h0, X)
    out = Y.reshape(-1, Y.shape[-1]) @ W_d.T + b_d
    return out, h_last.reshape(1, *h_last.shape)


if __name__ == "__main__":
    # Small deterministic problem: seq T=8, batch B=8, input D=16, hidden H=32, out O=8
    T, B, D, H, O = 8, 8, 16, 32, 8

    key = jax.random.PRNGKey(0)
    ks = jax.random.split(key, 8)
    scale_rnn = 1.0 / np.sqrt(H)
    scale_d = 1.0 / np.sqrt(H)

    params = {
        "W_ih": jax.random.uniform(ks[0], (H, D), jnp.float32, -scale_rnn, scale_rnn),
        "W_hh": jax.random.uniform(ks[1], (H, H), jnp.float32, -scale_rnn, scale_rnn),
        "b_ih": jax.random.uniform(ks[2], (H,), jnp.float32, -scale_rnn, scale_rnn),
        "b_hh": jax.random.uniform(ks[3], (H,), jnp.float32, -scale_rnn, scale_rnn),
        "W_dense": jax.random.uniform(ks[4], (O, H), jnp.float32, -scale_d, scale_d),
        "b_dense": jax.random.uniform(ks[5], (O,), jnp.float32, -scale_d, scale_d),
    }
    X = jax.random.normal(ks[6], (T, B, D), jnp.float32)
    h0 = jnp.zeros((B, H), jnp.float32)   # matches begin_state semantics

    out, state = rnn_forward(X, params, h0)
    jax.block_until_ready((out, state))

    ref_out, ref_state = _reference_forward(X, params, h0)
    assert out.shape == (T * B, O) and state.shape == (1, B, H)
    np.testing.assert_allclose(np.asarray(out), np.asarray(ref_out), rtol=1e-5, atol=1e-5)
    np.testing.assert_allclose(np.asarray(state), np.asarray(ref_state), rtol=1e-5, atol=1e-5)

    print("KERNEL_OK")
</pallas_src>

<mosaic_0001>
module attributes {stable_mosaic.version = 11 : i64} {
  func.func @_rnn_fused_kernel(%arg0: memref<64x16xf32, #tpu.memory_space<vmem>>, %arg1: memref<16x32xf32, #tpu.memory_space<vmem>>, %arg2: memref<32x32xf32, #tpu.memory_space<vmem>>, %arg3: memref<1x32xf32, #tpu.memory_space<vmem>>, %arg4: memref<32x128xf32, #tpu.memory_space<vmem>>, %arg5: memref<1x128xf32, #tpu.memory_space<vmem>>, %arg6: memref<8x32xf32, #tpu.memory_space<vmem>>, %arg7: memref<64x128xf32, #tpu.memory_space<vmem>>, %arg8: memref<8x32xf32, #tpu.memory_space<vmem>>, %arg9: memref<64x32xf32, #tpu.memory_space<vmem>>, %arg10: memref<64x32xf32, #tpu.memory_space<vmem>>) attributes {dimension_semantics = [], scalar_prefetch = 0 : i64, scratch_operands = 2 : i64, tpu.core_type = #tpu.core_type<tc>} {
    %c0 = arith.constant 0 : index
    %c0_0 = arith.constant 0 : index
    %0 = vector.load %arg0[%c0, %c0_0] : memref<64x16xf32, #tpu.memory_space<vmem>>, vector<64x16xf32>
    %c0_1 = arith.constant 0 : index
    %c0_2 = arith.constant 0 : index
    %1 = vector.load %arg1[%c0_1, %c0_2] : memref<16x32xf32, #tpu.memory_space<vmem>>, vector<16x32xf32>
    %cst = arith.constant dense<0.000000e+00> : vector<64x32xf32>
    %2 = tpu.matmul %0, %1, %cst {dimension_numbers = #tpu.dot_dimension_numbers<[1], [0], [0], [1], [0, 0, 1, 1], [], []>} : vector<64x16xf32>, vector<16x32xf32>, vector<64x32xf32> -> vector<64x32xf32>
    %c0_3 = arith.constant 0 : index
    %c0_4 = arith.constant 0 : index
    %3 = vector.load %arg3[%c0_3, %c0_4] : memref<1x32xf32, #tpu.memory_space<vmem>>, vector<1x32xf32>
    %4 = vector.broadcast %3 : vector<1x32xf32> to vector<64x32xf32>
    %5 = arith.addf %2, %4 : vector<64x32xf32>
    %c0_5 = arith.constant 0 : index
    %c0_6 = arith.constant 0 : index
    %6 = vector.load %arg9[%c0_5, %c0_6] : memref<64x32xf32, #tpu.memory_space<vmem>>, vector<64x32xf32>
    tpu.vector_store %arg9[%c0_5, %c0_6], %5 {strides = array<i32>} : memref<64x32xf32, #tpu.memory_space<vmem>>, vector<64x32xf32>,
    %c0_7 = arith.constant 0 : index
    %c0_8 = arith.constant 0 : index
    %7 = vector.load %arg2[%c0_7, %c0_8] : memref<32x32xf32, #tpu.memory_space<vmem>>, vector<32x32xf32>
    %c0_9 = arith.constant 0 : index
    %c0_10 = arith.constant 0 : index
    %8 = vector.load %arg6[%c0_9, %c0_10] : memref<8x32xf32, #tpu.memory_space<vmem>>, vector<8x32xf32>
    %c0_i32 = arith.constant 0 : i32
    %c8_i32 = arith.constant 8 : i32
    %9 = arith.muli %c0_i32, %c8_i32 : i32
    %10 = tpu.assume_multiple %9, 8 : i32
    %11 = arith.index_cast %10 : i32 to index
    %c0_11 = arith.constant 0 : index
    %12 = vector.load %arg9[%11, %c0_11] : memref<64x32xf32, #tpu.memory_space<vmem>>, vector<8x32xf32>
    %cst_12 = arith.constant dense<0.000000e+00> : vector<8x32xf32>
    %13 = tpu.matmul %8, %7, %cst_12 {dimension_numbers = #tpu.dot_dimension_numbers<[1], [0], [0], [1], [0, 0, 1, 1], [], []>} : vector<8x32xf32>, vector<32x32xf32>, vector<8x32xf32> -> vector<8x32xf32>
    %14 = arith.addf %12, %13 : vector<8x32xf32>
    %15 = math.tanh %14 : vector<8x32xf32>
    %16 = arith.index_cast %10 : i32 to index
    %c0_13 = arith.constant 0 : index
    %17 = vector.load %arg10[%16, %c0_13] : memref<64x32xf32, #tpu.memory_space<vmem>>, vector<8x32xf32>
    tpu.vector_store %arg10[%16, %c0_13], %15 {strides = array<i32>} : memref<64x32xf32, #tpu.memory_space<vmem>>, vector<8x32xf32>,
    %c1_i32 = arith.constant 1 : i32
    %c8_i32_14 = arith.constant 8 : i32
    %18 = arith.muli %c1_i32, %c8_i32_14 : i32
    %19 = tpu.assume_multiple %18, 8 : i32
    %20 = arith.index_cast %19 : i32 to index
    %c0_15 = arith.constant 0 : index
    %21 = vector.load %arg9[%20, %c0_15] : memref<64x32xf32, #tpu.memory_space<vmem>>, vector<8x32xf32>
    %cst_16 = arith.constant dense<0.000000e+00> : vector<8x32xf32>
    %22 = tpu.matmul %15, %7, %cst_16 {dimension_numbers = #tpu.dot_dimension_numbers<[1], [0], [0], [1], [0, 0, 1, 1], [], []>} : vector<8x32xf32>, vector<32x32xf32>, vector<8x32xf32> -> vector<8x32xf32>
    %23 = arith.addf %21, %22 : vector<8x32xf32>
    %24 = math.tanh %23 : vector<8x32xf32>
    %25 = arith.index_cast %19 : i32 to index
    %c0_17 = arith.constant 0 : index
    %26 = vector.load %arg10[%25, %c0_17] : memref<64x32xf32, #tpu.memory_space<vmem>>, vector<8x32xf32>
    tpu.vector_store %arg10[%25, %c0_17], %24 {strides = array<i32>} : memref<64x32xf32, #tpu.memory_space<vmem>>, vector<8x32xf32>,
    %c2_i32 = arith.constant 2 : i32
    %c8_i32_18 = arith.constant 8 : i32
    %27 = arith.muli %c2_i32, %c8_i32_18 : i32
    %28 = tpu.assume_multiple %27, 8 : i32
    %29 = arith.index_cast %28 : i32 to index
    %c0_19 = arith.constant 0 : index
    %30 = vector.load %arg9[%29, %c0_19] : memref<64x32xf32, #tpu.memory_space<vmem>>, vector<8x32xf32>
    %cst_20 = arith.constant dense<0.000000e+00> : vector<8x32xf32>
    %31 = tpu.matmul %24, %7, %cst_20 {dimension_numbers = #tpu.dot_dimension_numbers<[1], [0], [0], [1], [0, 0, 1, 1], [], []>} : vector<8x32xf32>, vector<32x32xf32>, vector<8x32xf32> -> vector<8x32xf32>
    %32 = arith.addf %30, %31 : vector<8x32xf32>
    %33 = math.tanh %32 : vector<8x32xf32>
    %34 = arith.index_cast %28 : i32 to index
    %c0_21 = arith.constant 0 : index
    %35 = vector.load %arg10[%34, %c0_21] : memref<64x32xf32, #tpu.memory_space<vmem>>, vector<8x32xf32>
    tpu.vector_store %arg10[%34, %c0_21], %33 {strides = array<i32>} : memref<64x32xf32, #tpu.memory_space<vmem>>, vector<8x32xf32>,
    %c3_i32 = arith.constant 3 : i32
    %c8_i32_22 = arith.constant 8 : i32
    %36 = arith.muli %c3_i32, %c8_i32_22 : i32
    %37 = tpu.assume_multiple %36, 8 : i32
    %38 = arith.index_cast %37 : i32 to index
    %c0_23 = arith.constant 0 : index
    %39 = vector.load %arg9[%38, %c0_23] : memref<64x32xf32, #tpu.memory_space<vmem>>, vector<8x32xf32>
    %cst_24 = arith.constant dense<0.000000e+00> : vector<8x32xf32>
    %40 = tpu.matmul %33, %7, %cst_24 {dimension_numbers = #tpu.dot_dimension_numbers<[1], [0], [0], [1], [0, 0, 1, 1], [], []>} : vector<8x32xf32>, vector<32x32xf32>, vector<8x32xf32> -> vector<8x32xf32>
    %41 = arith.addf %39, %40 : vector<8x32xf32>
    %42 = math.tanh %41 : vector<8x32xf32>
    %43 = arith.index_cast %37 : i32 to index
    %c0_25 = arith.constant 0 : index
    %44 = vector.load %arg10[%43, %c0_25] : memref<64x32xf32, #tpu.memory_space<vmem>>, vector<8x32xf32>
    tpu.vector_store %arg10[%43, %c0_25], %42 {strides = array<i32>} : memref<64x32xf32, #tpu.memory_space<vmem>>, vector<8x32xf32>,
    %c4_i32 = arith.constant 4 : i32
    %c8_i32_26 = arith.constant 8 : i32
    %45 = arith.muli %c4_i32, %c8_i32_26 : i32
    %46 = tpu.assume_multiple %45, 8 : i32
    %47 = arith.index_cast %46 : i32 to index
    %c0_27 = arith.constant 0 : index
    %48 = vector.load %arg9[%47, %c0_27] : memref<64x32xf32, #tpu.memory_space<vmem>>, vector<8x32xf32>
    %cst_28 = arith.constant dense<0.000000e+00> : vector<8x32xf32>
    %49 = tpu.matmul %42, %7, %cst_28 {dimension_numbers = #tpu.dot_dimension_numbers<[1], [0], [0], [1], [0, 0, 1, 1], [], []>} : vector<8x32xf32>, vector<32x32xf32>, vector<8x32xf32> -> vector<8x32xf32>
    %50 = arith.addf %48, %49 : vector<8x32xf32>
    %51 = math.tanh %50 : vector<8x32xf32>
    %52 = arith.index_cast %46 : i32 to index
    %c0_29 = arith.constant 0 : index
    %53 = vector.load %arg10[%52, %c0_29] : memref<64x32xf32, #tpu.memory_space<vmem>>, vector<8x32xf32>
    tpu.vector_store %arg10[%52, %c0_29], %51 {strides = array<i32>} : memref<64x32xf32, #tpu.memory_space<vmem>>, vector<8x32xf32>,
    %c5_i32 = arith.constant 5 : i32
    %c8_i32_30 = arith.constant 8 : i32
    %54 = arith.muli %c5_i32, %c8_i32_30 : i32
    %55 = tpu.assume_multiple %54, 8 : i32
    %56 = arith.index_cast %55 : i32 to index
    %c0_31 = arith.constant 0 : index
    %57 = vector.load %arg9[%56, %c0_31] : memref<64x32xf32, #tpu.memory_space<vmem>>, vector<8x32xf32>
    %cst_32 = arith.constant dense<0.000000e+00> : vector<8x32xf32>
    %58 = tpu.matmul %51, %7, %cst_32 {dimension_numbers = #tpu.dot_dimension_numbers<[1], [0], [0], [1], [0, 0, 1, 1], [], []>} : vector<8x32xf32>, vector<32x32xf32>, vector<8x32xf32> -> vector<8x32xf32>
    %59 = arith.addf %57, %58 : vector<8x32xf32>
    %60 = math.tanh %59 : vector<8x32xf32>
    %61 = arith.index_cast %55 : i32 to index
    %c0_33 = arith.constant 0 : index
    %62 = vector.load %arg10[%61, %c0_33] : memref<64x32xf32, #tpu.memory_space<vmem>>, vector<8x32xf32>
    tpu.vector_store %arg10[%61, %c0_33], %60 {strides = array<i32>} : memref<64x32xf32, #tpu.memory_space<vmem>>, vector<8x32xf32>,
    %c6_i32 = arith.constant 6 : i32
    %c8_i32_34 = arith.constant 8 : i32
    %63 = arith.muli %c6_i32, %c8_i32_34 : i32
    %64 = tpu.assume_multiple %63, 8 : i32
    %65 = arith.index_cast %64 : i32 to index
    %c0_35 = arith.constant 0 : index
    %66 = vector.load %arg9[%65, %c0_35] : memref<64x32xf32, #tpu.memory_space<vmem>>, vector<8x32xf32>
    %cst_36 = arith.constant dense<0.000000e+00> : vector<8x32xf32>
    %67 = tpu.matmul %60, %7, %cst_36 {dimension_numbers = #tpu.dot_dimension_numbers<[1], [0], [0], [1], [0, 0, 1, 1], [], []>} : vector<8x32xf32>, vector<32x32xf32>, vector<8x32xf32> -> vector<8x32xf32>
    %68 = arith.addf %66, %67 : vector<8x32xf32>
    %69 = math.tanh %68 : vector<8x32xf32>
    %70 = arith.index_cast %64 : i32 to index
    %c0_37 = arith.constant 0 : index
    %71 = vector.load %arg10[%70, %c0_37] : memref<64x32xf32, #tpu.memory_space<vmem>>, vector<8x32xf32>
    tpu.vector_store %arg10[%70, %c0_37], %69 {strides = array<i32>} : memref<64x32xf32, #tpu.memory_space<vmem>>, vector<8x32xf32>,
    %c7_i32 = arith.constant 7 : i32
    %c8_i32_38 = arith.constant 8 : i32
    %72 = arith.muli %c7_i32, %c8_i32_38 : i32
    %73 = tpu.assume_multiple %72, 8 : i32
    %74 = arith.index_cast %73 : i32 to index
    %c0_39 = arith.constant 0 : index
    %75 = vector.load %arg9[%74, %c0_39] : memref<64x32xf32, #tpu.memory_space<vmem>>, vector<8x32xf32>
    %cst_40 = arith.constant dense<0.000000e+00> : vector<8x32xf32>
    %76 = tpu.matmul %69, %7, %cst_40 {dimension_numbers = #tpu.dot_dimension_numbers<[1], [0], [0], [1], [0, 0, 1, 1], [], []>} : vector<8x32xf32>, vector<32x32xf32>, vector<8x32xf32> -> vector<8x32xf32>
    %77 = arith.addf %75, %76 : vector<8x32xf32>
    %78 = math.tanh %77 : vector<8x32xf32>
    %79 = arith.index_cast %73 : i32 to index
    %c0_41 = arith.constant 0 : index
    %80 = vector.load %arg10[%79, %c0_41] : memref<64x32xf32, #tpu.memory_space<vmem>>, vector<8x32xf32>
    tpu.vector_store %arg10[%79, %c0_41], %78 {strides = array<i32>} : memref<64x32xf32, #tpu.memory_space<vmem>>, vector<8x32xf32>,
    %c8_i32_42 = arith.constant 8 : i32
    %c0_43 = arith.constant 0 : index
    %c0_44 = arith.constant 0 : index
    %81 = vector.load %arg10[%c0_43, %c0_44] : memref<64x32xf32, #tpu.memory_space<vmem>>, vector<64x32xf32>
    %c0_45 = arith.constant 0 : index
    %c0_46 = arith.constant 0 : index
    %82 = vector.load %arg4[%c0_45, %c0_46] : memref<32x128xf32, #tpu.memory_space<vmem>>, vector<32x128xf32>
    %cst_47 = arith.constant dense<0.000000e+00> : vector<64x128xf32>
    %83 = tpu.matmul %81, %82, %cst_47 {dimension_numbers = #tpu.dot_dimension_numbers<[1], [0], [0], [1], [0, 0, 1, 1], [], []>} : vector<64x32xf32>, vector<32x128xf32>, vector<64x128xf32> -> vector<64x128xf32>
    %c0_48 = arith.constant 0 : index
    %c0_49 = arith.constant 0 : index
    %84 = vector.load %arg5[%c0_48, %c0_49] : memref<1x128xf32, #tpu.memory_space<vmem>>, vector<1x128xf32>
    %85 = vector.broadcast %84 : vector<1x128xf32> to vector<64x128xf32>
    %86 = arith.addf %83, %85 : vector<64x128xf32>
    %c0_50 = arith.constant 0 : index
    %c0_51 = arith.constant 0 : index
    %87 = vector.load %arg7[%c0_50, %c0_51] : memref<64x128xf32, #tpu.memory_space<vmem>>, vector<64x128xf32>
    tpu.vector_store %arg7[%c0_50, %c0_51], %86 {strides = array<i32>} : memref<64x128xf32, #tpu.memory_space<vmem>>, vector<64x128xf32>,
    %c0_52 = arith.constant 0 : index
    %c0_53 = arith.constant 0 : index
    %88 = vector.load %arg8[%c0_52, %c0_53] : memref<8x32xf32, #tpu.memory_space<vmem>>, vector<8x32xf32>
    tpu.vector_store %arg8[%c0_52, %c0_53], %78 {strides = array<i32>} : memref<8x32xf32, #tpu.memory_space<vmem>>, vector<8x32xf32>,
    return
  }
}

</mosaic_0001>

<llo_original>
// kernel: tpu_custom_call.1
$region0: #{tpu_custom_call.1}
  #allocation0 [shape = 'u32[]', space=smem, size = 0x4, offset = 0x4, fixed_abs, tag = 'smem constant byte address 0x4 - core index']
  #allocation1 [shape = 'u32[144,128]{1,0:T(1,128)}', space=vmem, size = 0x12000, scoped, tag = 'internal scratch']
  #allocation2 [shape = 'f32[64,32]{1,0:T(8,128)}', space=vmem, size = 0x8000, scoped, tag = 'scratch operand']
  #allocation3 [shape = 'f32[64,32]{1,0:T(8,128)}', space=vmem, size = 0x8000, scoped, tag = 'scratch operand']
  %s0 = inlined_call_operand.vmem [shape: f32[64,16], index: 0, kind: input, shape index: {}]
  %s1 = inlined_call_operand.vmem [shape: f32[16,32], index: 1, kind: input, shape index: {}]
  %s2 = inlined_call_operand.vmem [shape: f32[32,32], index: 2, kind: input, shape index: {}]
  %s3 = inlined_call_operand.vmem [shape: f32[1,32], index: 3, kind: input, shape index: {}]
  %s4 = inlined_call_operand.vmem [shape: f32[32,128], index: 4, kind: input, shape index: {}]
  %s5 = inlined_call_operand.vmem [shape: f32[1,128], index: 5, kind: input, shape index: {}]
  %s6 = inlined_call_operand.vmem [shape: f32[8,32], index: 6, kind: input, shape index: {}]
  %s7 = inlined_call_operand.hbm [shape: f32[64,128], index: 7, kind: output, shape index: {0}]
  %s8 = inlined_call_operand.hbm [shape: f32[8,32], index: 8, kind: output, shape index: {1}]
  %9 = xla_tuple %s7, %s8
  %s10 = sld [smem:[#allocation0]]
  $region46: #{tpu_custom_call.1} parent=0
    _
  %s12 = ssub.s32 1, %s10
  %s13 = scalar_select 0, %s12, %s10
  $region1: #{tpu_custom_call.1} parent=0
    #allocation4 [shape = 'u8[32768]{0}', space=vmem, size = 0x8000, scoped, tag = 'output window, operand 0, single buffered']
    #allocation5 [shape = 's32[1]{0}', space=sflag, size = 0x4, scoped, tag = 'scoped memory for tpu_custom_call.1']
    #allocation6 [shape = 'u8[4096]{0}', space=vmem, size = 0x1000, scoped, tag = 'output window, operand 1, single buffered']
    #allocation7 [shape = 's32[1]{0}', space=sflag, size = 0x4, scoped, tag = 'scoped memory for tpu_custom_call.1']
    %14 = vsyncpa [#allocation5], 0
    %15 = vsyncpa [#allocation7], 0
    // Predicated region
    $region2: #{tpu_custom_call.1} parent=1 // pred_check
      _
    $region3: #{tpu_custom_call.1} parent=1 // pred_check_branch
      %17 = sbr.rel (0) target = $region5
    $region4: #{tpu_custom_call.1} parent=1 // pred_region
      _
    $region5: #{tpu_custom_call.1} parent=1 // pred_fallthru
      _
    // Predicated region
    $region6: #{tpu_custom_call.1} parent=1 // pred_check
      _
    $region7: #{tpu_custom_call.1} parent=1 // pred_check_branch
      %19 = sbr.rel (0) target = $region9
    $region8: #{tpu_custom_call.1} parent=1 // pred_region
      _
    $region9: #{tpu_custom_call.1} parent=1 // pred_fallthru
      _
    // Predicated region
    $region10: #{tpu_custom_call.1} parent=1 // pred_check
      _
    $region11: #{tpu_custom_call.1} parent=1 // pred_check_branch
      %21 = sbr.rel (0) target = $region13
    $region12: #{tpu_custom_call.1} parent=1 // pred_region
      _
    $region13: #{tpu_custom_call.1} parent=1 // pred_fallthru
      _
    // Predicated region
    $region14: #{tpu_custom_call.1} parent=1 // pred_check
      _
    $region15: #{tpu_custom_call.1} parent=1 // pred_check_branch
      %23 = sbr.rel (0) target = $region17
    $region16: #{tpu_custom_call.1} parent=1 // pred_region
      _
    $region17: #{tpu_custom_call.1} parent=1 // pred_fallthru
      _
    // Predicated region
    $region18: #{tpu_custom_call.1} parent=1 // pred_check
      _
    $region19: #{tpu_custom_call.1} parent=1 // pred_check_branch
      %25 = sbr.rel (0) target = $region21
    $region20: #{tpu_custom_call.1} parent=1 // pred_region
      _
    $region21: #{tpu_custom_call.1} parent=1 // pred_fallthru
      _
    // Predicated region
    $region22: #{tpu_custom_call.1} parent=1 // pred_check
      _
    $region23: #{tpu_custom_call.1} parent=1 // pred_check_branch
      %27 = sbr.rel (0) target = $region25
    $region24: #{tpu_custom_call.1} parent=1 // pred_region
      _
    $region25: #{tpu_custom_call.1} parent=1 // pred_fallthru
      _
    // Predicated region
    $region26: #{tpu_custom_call.1} parent=1 // pred_check
      _
    $region27: #{tpu_custom_call.1} parent=1 // pred_check_branch
      %29 = sbr.rel (0) target = $region29
    $region28: #{tpu_custom_call.1} parent=1 // pred_region
      _
    $region29: #{tpu_custom_call.1} parent=1 // pred_fallthru
      _
    %v30 = vld [vmem:[%s0] sm:$0xff]
    %v31 = vld [vmem:[%s0 + $0x8] sm:$0xff]
    %v32 = vld [vmem:[%s0 + $0x10] sm:$0xff]
    %v33 = vld [vmem:[%s0 + $0x18] sm:$0xff]
    %v34 = vld [vmem:[%s0 + $0x20] sm:$0xff]
    %v35 = vld [vmem:[%s0 + $0x28] sm:$0xff]
    %v36 = vld [vmem:[%s0 + $0x30] sm:$0xff]
    %v37 = vld [vmem:[%s0 + $0x38] sm:$0xff]
    %v38 = vld [vmem:[%s1] sm:$0xff]
    %v39 = vld [vmem:[%s1 + $0x8] sm:$0xff]
    %v40 = vld [vmem:[%s3] sm:$0x1]
    %v42 = vlaneseq
    %v43 = vshrl.u32 %v42, 7
    %v44 = vsub.s32 0, %v43
    %v45 = vrot.slane %v40, %v44
    %vm47 = vcmask 130048
    %v49 = vsel %vm47, %v30, 0
    %v52 = vsel %vm47, %v31, 0
    %v55 = vsel %vm47, %v32, 0
    %v58 = vsel %vm47, %v33, 0
    %v61 = vsel %vm47, %v34, 0
    %v64 = vsel %vm47, %v35, 0
    %v67 = vsel %vm47, %v36, 0
    %v70 = vsel %vm47, %v37, 0
    %72 = vmatprep.subr.mxu0 0.0
    %73 = vmatpush1.msra.mxu0 %v38
    %74 = vmatprep.subr.mxu0 0.0
    %75 = vmatpush1.msra.mxu0 %v39
    %76 = vmatprep.subr.mxu0 0.0
    %77 = vmatpush1.msra.mxu0 0.0
    %78 = vmatprep.subr.mxu0 0.0
    %79 = vmatpush1.msra.mxu0 0.0
    %80 = vmatprep.subr.mxu0 0.0
    %81 = vmatpush1.msra.mxu0 0.0
    %82 = vmatprep.subr.mxu0 0.0
    %83 = vmatpush1.msra.mxu0 0.0
    %84 = vmatprep.subr.mxu0 0.0
    %85 = vmatpush1.msra.mxu0 0.0
    %86 = vmatprep.subr.mxu0 0.0
    %87 = vmatpush1.msra.mxu0 0.0
    %88 = vmatprep.subr.mxu0 0.0
    %89 = vmatpush1.msra.mxu0 0.0
    %90 = vmatprep.subr.mxu0 0.0
    %91 = vmatpush1.msra.mxu0 0.0
    %92 = vmatprep.subr.mxu0 0.0
    %93 = vmatpush1.msra.mxu0 0.0
    %94 = vmatprep.subr.mxu0 0.0
    %95 = vmatpush1.msra.mxu0 0.0
    %96 = vmatprep.subr.mxu0 0.0
    %97 = vmatpush1.msra.mxu0 0.0
    %98 = vmatprep.subr.mxu0 0.0
    %99 = vmatpush1.msra.mxu0 0.0
    %100 = vmatprep.subr.mxu0 0.0
    %101 = vmatpush1.msra.mxu0 0.0
    %102 = vmatprep.subr.mxu0 0.0
    %103 = vmatpush1.msra.mxu0 0.0
    %104 = vmatprep.subr.mxu0 0.0
    %105 = vmatpush1.msra.mxu0 0.0
    %106 = vmatprep.subr.mxu0 0.0
    %107 = vmatpush1.msra.mxu0 0.0
    %108 = vmatprep.subr.mxu0 0.0
    %109 = vmatpush1.msra.mxu0 0.0
    %110 = vmatprep.subr.mxu0 0.0
    %111 = vmatpush1.msra.mxu0 0.0
    %112 = vmatprep.subr.mxu0 0.0
    %113 = vmatpush1.msra.mxu0 0.0
    %114 = vmatprep.subr.mxu0 0.0
    %115 = vmatpush1.msra.mxu0 0.0
    %116 = vmatprep.subr.mxu0 0.0
    %117 = vmatpush1.msra.mxu0 0.0
    %118 = vmatprep.subr.mxu0 0.0
    %119 = vmatpush1.msra.mxu0 0.0
    %120 = vmatprep.subr.mxu0 0.0
    %121 = vmatpush1.msra.mxu0 0.0
    %122 = vmatprep.subr.mxu0 0.0
    %123 = vmatpush1.msra.mxu0 0.0
    %124 = vmatprep.subr.mxu0 0.0
    %125 = vmatpush1.msra.mxu0 0.0
    %126 = vmatprep.subr.mxu0 0.0
    %127 = vmatpush1.msra.mxu0 0.0
    %128 = vmatprep.subr.mxu0 0.0
    %129 = vmatpush1.msra.mxu0 0.0
    %130 = vmatprep.subr.mxu0 0.0
    %131 = vmatpush1.msra.mxu0 0.0
    %132 = vmatprep.subr.mxu0 0.0
    %133 = vmatpush1.msra.mxu0 0.0
    %134 = vmatprep.subr.mxu0 0.0
    %135 = vmatpush1.msra.mxu0 0.0
    %136 = vmatprep.mubr.f32.mxu0 0.0
    %137 = vmatmul.mubr.f32.gmra.mrb[0].mxu0 %v49
    %v138 = vpop.f32.mrb[0].mxu0
    %v139 = vadd.f32 %v45, %v138
    %v140 = vpop.f32.mrb[0].mxu0
    %141 = vmatprep.mubr.f32.mxu0 0.0
    %142 = vmatmul.mubr.f32.gmra.mrb[0].mxu0 %v52
    %v143 = vpop.f32.mrb[0].mxu0
    %v144 = vadd.f32 %v45, %v143
    %v145 = vpop.f32.mrb[0].mxu0
    %146 = vmatprep.mubr.f32.mxu0 0.0
    %147 = vmatmul.mubr.f32.gmra.mrb[0].mxu0 %v55
    %v148 = vpop.f32.mrb[0].mxu0
    %v149 = vadd.f32 %v45, %v148
    %v150 = vpop.f32.mrb[0].mxu0
    %151 = vmatprep.mubr.f32.mxu0 0.0
    %152 = vmatmul.mubr.f32.gmra.mrb[0].mxu0 %v58
    %v153 = vpop.f32.mrb[0].mxu0
    %v154 = vadd.f32 %v45, %v153
    %v155 = vpop.f32.mrb[0].mxu0
    %156 = vmatprep.mubr.f32.mxu0 0.0
    %157 = vmatmul.mubr.f32.gmra.mrb[0].mxu0 %v61
    %v158 = vpop.f32.mrb[0].mxu0
    %v159 = vadd.f32 %v45, %v158
    %v160 = vpop.f32.mrb[0].mxu0
    %161 = vmatprep.mubr.f32.mxu0 0.0
    %162 = vmatmul.mubr.f32.gmra.mrb[0].mxu0 %v64
    %v163 = vpop.f32.mrb[0].mxu0
    %v164 = vadd.f32 %v45, %v163
    %v165 = vpop.f32.mrb[0].mxu0
    %166 = vmatprep.mubr.f32.mxu0 0.0
    %167 = vmatmul.mubr.f32.gmra.mrb[0].mxu0 %v67
    %v168 = vpop.f32.mrb[0].mxu0
    %v169 = vadd.f32 %v45, %v168
    %v170 = vpop.f32.mrb[0].mxu0
    %171 = vmatprep.mubr.f32.mxu0 0.0
    %172 = vmatmul.mubr.f32.gmra.mrb[0].mxu0 %v70
    %v173 = vpop.f32.mrb[0].mxu0
    %v174 = vadd.f32 %v45, %v173
    %v175 = vpop.f32.mrb[0].mxu0
    %176 = vdwg.mxu0
    %vm177 = vcmask 261120
    %178 = vst.msk [vmem:[#allocation2] sm:$0xff] %vm177, %v139
    %179 = vst.msk [vmem:[#allocation2 + $0x8] sm:$0xff] %vm177, %v144
    %180 = vst.msk [vmem:[#allocation2 + $0x10] sm:$0xff] %vm177, %v149
    %181 = vst.msk [vmem:[#allocation2 + $0x18] sm:$0xff] %vm177, %v154
    %182 = vst.msk [vmem:[#allocation2 + $0x20] sm:$0xff] %vm177, %v159
    %183 = vst.msk [vmem:[#allocation2 + $0x28] sm:$0xff] %vm177, %v164
    %184 = vst.msk [vmem:[#allocation2 + $0x30] sm:$0xff] %vm177, %v169
    %185 = vst.msk [vmem:[#allocation2 + $0x38] sm:$0xff] %vm177, %v174
    %v186 = vld [vmem:[%s2] sm:$0xff]
    %v187 = vld [vmem:[%s2 + $0x8] sm:$0xff]
    %v188 = vld [vmem:[%s2 + $0x10] sm:$0xff]
    %v189 = vld [vmem:[%s2 + $0x18] sm:$0xff]
    %v190 = vld [vmem:[%s6] sm:$0xff]
    %v191 = vld [vmem:[#allocation2] sm:$0xff]
    %v193 = vsel %vm177, %v190, 0
    %195 = vmatprep.subr.mxu0 0.0
    %196 = vmatpush1.msra.mxu0 %v186
    %197 = vmatprep.subr.mxu0 0.0
    %198 = vmatpush1.msra.mxu0 %v187
    %199 = vmatprep.subr.mxu0 0.0
    %200 = vmatpush1.msra.mxu0 %v188
    %201 = vmatprep.subr.mxu0 0.0
    %202 = vmatpush1.msra.mxu0 %v189
    %203 = vmatprep.subr.mxu0 0.0
    %204 = vmatpush1.msra.mxu0 0.0
    %205 = vmatprep.subr.mxu0 0.0
    %206 = vmatpush1.msra.mxu0 0.0
    %207 = vmatprep.subr.mxu0 0.0
    %208 = vmatpush1.msra.mxu0 0.0
    %209 = vmatprep.subr.mxu0 0.0
    %210 = vmatpush1.msra.mxu0 0.0
    %211 = vmatprep.subr.mxu0 0.0
    %212 = vmatpush1.msra.mxu0 0.0
    %213 = vmatprep.subr.mxu0 0.0
    %214 = vmatpush1.msra.mxu0 0.0
    %215 = vmatprep.subr.mxu0 0.0
    %216 = vmatpush1.msra.mxu0 0.0
    %217 = vmatprep.subr.mxu0 0.0
    %218 = vmatpush1.msra.mxu0 0.0
    %219 = vmatprep.subr.mxu0 0.0
    %220 = vmatpush1.msra.mxu0 0.0
    %221 = vmatprep.subr.mxu0 0.0
    %222 = vmatpush1.msra.mxu0 0.0
    %223 = vmatprep.subr.mxu0 0.0
    %224 = vmatpush1.msra.mxu0 0.0
    %225 = vmatprep.subr.mxu0 0.0
    %226 = vmatpush1.msra.mxu0 0.0
    %227 = vmatprep.subr.mxu0 0.0
    %228 = vmatpush1.msra.mxu0 0.0
    %229 = vmatprep.subr.mxu0 0.0
    %230 = vmatpush1.msra.mxu0 0.0
    %231 = vmatprep.subr.mxu0 0.0
    %232 = vmatpush1.msra.mxu0 0.0
    %233 = vmatprep.subr.mxu0 0.0
    %234 = vmatpush1.msra.mxu0 0.0
    %235 = vmatprep.subr.mxu0 0.0
    %236 = vmatpush1.msra.mxu0 0.0
    %237 = vmatprep.subr.mxu0 0.0
    %238 = vmatpush1.msra.mxu0 0.0
    %239 = vmatprep.subr.mxu0 0.0
    %240 = vmatpush1.msra.mxu0 0.0
    %241 = vmatprep.subr.mxu0 0.0
    %242 = vmatpush1.msra.mxu0 0.0
    %243 = vmatprep.subr.mxu0 0.0
    %244 = vmatpush1.msra.mxu0 0.0
    %245 = vmatprep.subr.mxu0 0.0
    %246 = vmatpush1.msra.mxu0 0.0
    %247 = vmatprep.subr.mxu0 0.0
    %248 = vmatpush1.msra.mxu0 0.0
    %249 = vmatprep.subr.mxu0 0.0
    %250 = vmatpush1.msra.mxu0 0.0
    %251 = vmatprep.subr.mxu0 0.0
    %252 = vmatpush1.msra.mxu0 0.0
    %253 = vmatprep.subr.mxu0 0.0
    %254 = vmatpush1.msra.mxu0 0.0
    %255 = vmatprep.subr.mxu0 0.0
    %256 = vmatpush1.msra.mxu0 0.0
    %257 = vmatprep.subr.mxu0 0.0
    %258 = vmatpush1.msra.mxu0 0.0
    %259 = vmatprep.mubr.f32.mxu0 0.0
    %260 = vmatmul.mubr.f32.gmra.mrb[0].mxu0 %v193
    %v261 = vpop.f32.mrb[0].mxu0
    %v262 = vadd.f32 0.0, %v261
    %v263 = vpop.f32.mrb[0].mxu0
    %264 = vdwg.mxu0
    %v265 = vadd.f32 %v191, %v262
    %v266 = vtanh.pop %v265
    %267 = vst.msk [vmem:[#allocation3] sm:$0xff] %vm177, %v266
    %s268 = scalar_lea.vmem [#allocation2], 8
    %v269 = vld [vmem:[%s268] sm:$0xff]
    %v271 = vsel %vm177, %v266, 0
    %273 = vmatprep.subr.mxu0 0.0
    %274 = vmatpush1.msra.mxu0 %v186
    %275 = vmatprep.subr.mxu0 0.0
    %276 = vmatpush1.msra.mxu0 %v187
    %277 = vmatprep.subr.mxu0 0.0
    %278 = vmatpush1.msra.mxu0 %v188
    %279 = vmatprep.subr.mxu0 0.0
    %280 = vmatpush1.msra.mxu0 %v189
    %281 = vmatprep.subr.mxu0 0.0
    %282 = vmatpush1.msra.mxu0 0.0
    %283 = vmatprep.subr.mxu0 0.0
    %284 = vmatpush1.msra.mxu0 0.0
    %285 = vmatprep.subr.mxu0 0.0
    %286 = vmatpush1.msra.mxu0 0.0
    %287 = vmatprep.subr.mxu0 0.0
    %288 = vmatpush1.msra.mxu0 0.0
    %289 = vmatprep.subr.mxu0 0.0
    %290 = vmatpush1.msra.mxu0 0.0
    %291 = vmatprep.subr.mxu0 0.0
    %292 = vmatpush1.msra.mxu0 0.0
    %293 = vmatprep.subr.mxu0 0.0
    %294 = vmatpush1.msra.mxu0 0.0
    %295 = vmatprep.subr.mxu0 0.0
    %296 = vmatpush1.msra.mxu0 0.0
    %297 = vmatprep.subr.mxu0 0.0
    %298 = vmatpush1.msra.mxu0 0.0
    %299 = vmatprep.subr.mxu0 0.0
    %300 = vmatpush1.msra.mxu0 0.0
    %301 = vmatprep.subr.mxu0 0.0
    %302 = vmatpush1.msra.mxu0 0.0
    %303 = vmatprep.subr.mxu0 0.0
    %304 = vmatpush1.msra.mxu0 0.0
    %305 = vmatprep.subr.mxu0 0.0
    %306 = vmatpush1.msra.mxu0 0.0
    %307 = vmatprep.subr.mxu0 0.0
    %308 = vmatpush1.msra.mxu0 0.0
    %309 = vmatprep.subr.mxu0 0.0
    %310 = vmatpush1.msra.mxu0 0.0
    %311 = vmatprep.subr.mxu0 0.0
    %312 = vmatpush1.msra.mxu0 0.0
    %313 = vmatprep.subr.mxu0 0.0
    %314 = vmatpush1.msra.mxu0 0.0
    %315 = vmatprep.subr.mxu0 0.0
    %316 = vmatpush1.msra.mxu0 0.0
    %317 = vmatprep.subr.mxu0 0.0
    %318 = vmatpush1.msra.mxu0 0.0
    %319 = vmatprep.subr.mxu0 0.0
    %320 = vmatpush1.msra.mxu0 0.0
    %321 = vmatprep.subr.mxu0 0.0
    %322 = vmatpush1.msra.mxu0 0.0
    %323 = vmatprep.subr.mxu0 0.0
    %324 = vmatpush1.msra.mxu0 0.0
    %325 = vmatprep.subr.mxu0 0.0
    %326 = vmatpush1.msra.mxu0 0.0
    %327 = vmatprep.subr.mxu0 0.0
    %328 = vmatpush1.msra.mxu0 0.0
    %329 = vmatprep.subr.mxu0 0.0
    %330 = vmatpush1.msra.mxu0 0.0
    %331 = vmatprep.subr.mxu0 0.0
    %332 = vmatpush1.msra.mxu0 0.0
    %333 = vmatprep.subr.mxu0 0.0
    %334 = vmatpush1.msra.mxu0 0.0
    %335 = vmatprep.subr.mxu0 0.0
    %336 = vmatpush1.msra.mxu0 0.0
    %337 = vmatprep.mubr.f32.mxu0 0.0
    %338 = vmatmul.mubr.f32.gmra.mrb[0].mxu0 %v271
    %v339 = vpop.f32.mrb[0].mxu0
    %v340 = vadd.f32 0.0, %v339
    %v341 = vpop.f32.mrb[0].mxu0
    %342 = vdwg.mxu0
    %v343 = vadd.f32 %v269, %v340
    %v344 = vtanh.pop %v343
    %s345 = scalar_lea.vmem [#allocation3], 8
    %346 = vst.msk [vmem:[%s345] sm:$0xff] %vm177, %v344
    %s347 = scalar_lea.vmem [#allocation2], 16
    %v348 = vld [vmem:[%s347] sm:$0xff]
    %v350 = vsel %vm177, %v344, 0
    %352 = vmatprep.subr.mxu0 0.0
    %353 = vmatpush1.msra.mxu0 %v186
    %354 = vmatprep.subr.mxu0 0.0
    %355 = vmatpush1.msra.mxu0 %v187
    %356 = vmatprep.subr.mxu0 0.0
    %357 = vmatpush1.msra.mxu0 %v188
    %358 = vmatprep.subr.mxu0 0.0
    %359 = vmatpush1.msra.mxu0 %v189
    %360 = vmatprep.subr.mxu0 0.0
    %361 = vmatpush1.msra.mxu0 0.0
    %362 = vmatprep.subr.mxu0 0.0
    %363 = vmatpush1.msra.mxu0 0.0
    %364 = vmatprep.subr.mxu0 0.0
    %365 = vmatpush1.msra.mxu0 0.0
    %366 = vmatprep.subr.mxu0 0.0
    %367 = vmatpush1.msra.mxu0 0.0
    %368 = vmatprep.subr.mxu0 0.0
    %369 = vmatpush1.msra.mxu0 0.0
    %370 = vmatprep.subr.mxu0 0.0
    %371 = vmatpush1.msra.mxu0 0.0
    %372 = vmatprep.subr.mxu0 0.0
    %373 = vmatpush1.msra.mxu0 0.0
    %374 = vmatprep.subr.mxu0 0.0
    %375 = vmatpush1.msra.mxu0 0.0
    %376 = vmatprep.subr.mxu0 0.0
    %377 = vmatpush1.msra.mxu0 0.0
    %378 = vmatprep.subr.mxu0 0.0
    %379 = vmatpush1.msra.mxu0 0.0
    %380 = vmatprep.subr.mxu0 0.0
    %381 = vmatpush1.msra.mxu0 0.0
    %382 = vmatprep.subr.mxu0 0.0
    %383 = vmatpush1.msra.mxu0 0.0
    %384 = vmatprep.subr.mxu0 0.0
    %385 = vmatpush1.msra.mxu0 0.0
    %386 = vmatprep.subr.mxu0 0.0
    %387 = vmatpush1.msra.mxu0 0.0
    %388 = vmatprep.subr.mxu0 0.0
    %389 = vmatpush1.msra.mxu0 0.0
    %390 = vmatprep.subr.mxu0 0.0
    %391 = vmatpush1.msra.mxu0 0.0
    %392 = vmatprep.subr.mxu0 0.0
    %393 = vmatpush1.msra.mxu0 0.0
    %394 = vmatprep.subr.mxu0 0.0
    %395 = vmatpush1.msra.mxu0 0.0
    %396 = vmatprep.subr.mxu0 0.0
    %397 = vmatpush1.msra.mxu0 0.0
    %398 = vmatprep.subr.mxu0 0.0
    %399 = vmatpush1.msra.mxu0 0.0
    %400 = vmatprep.subr.mxu0 0.0
    %401 = vmatpush1.msra.mxu0 0.0
    %402 = vmatprep.subr.mxu0 0.0
    %403 = vmatpush1.msra.mxu0 0.0
    %404 = vmatprep.subr.mxu0 0.0
    %405 = vmatpush1.msra.mxu0 0.0
    %406 = vmatprep.subr.mxu0 0.0
    %407 = vmatpush1.msra.mxu0 0.0
    %408 = vmatprep.subr.mxu0 0.0
    %409 = vmatpush1.msra.mxu0 0.0
    %410 = vmatprep.subr.mxu0 0.0
    %411 = vmatpush1.msra.mxu0 0.0
    %412 = vmatprep.subr.mxu0 0.0
    %413 = vmatpush1.msra.mxu0 0.0
    %414 = vmatprep.subr.mxu0 0.0
    %415 = vmatpush1.msra.mxu0 0.0
    %416 = vmatprep.mubr.f32.mxu0 0.0
    %417 = vmatmul.mubr.f32.gmra.mrb[0].mxu0 %v350
    %v418 = vpop.f32.mrb[0].mxu0
    %v419 = vadd.f32 0.0, %v418
    %v420 = vpop.f32.mrb[0].mxu0
    %421 = vdwg.mxu0
    %v422 = vadd.f32 %v348, %v419
    %v423 = vtanh.pop %v422
    %s424 = scalar_lea.vmem [#allocation3], 16
    %425 = vst.msk [vmem:[%s424] sm:$0xff] %vm177, %v423
    %s426 = scalar_lea.vmem [#allocation2], 24
    %v427 = vld [vmem:[%s426] sm:$0xff]
    %v429 = vsel %vm177, %v423, 0
    %431 = vmatprep.subr.mxu0 0.0
    %432 = vmatpush1.msra.mxu0 %v186
    %433 = vmatprep.subr.mxu0 0.0
    %434 = vmatpush1.msra.mxu0 %v187
    %435 = vmatprep.subr.mxu0 0.0
    %436 = vmatpush1.msra.mxu0 %v188
    %437 = vmatprep.subr.mxu0 0.0
    %438 = vmatpush1.msra.mxu0 %v189
    %439 = vmatprep.subr.mxu0 0.0
    %440 = vmatpush1.msra.mxu0 0.0
    %441 = vmatprep.subr.mxu0 0.0
    %442 = vmatpush1.msra.mxu0 0.0
    %443 = vmatprep.subr.mxu0 0.0
    %444 = vmatpush1.msra.mxu0 0.0
    %445 = vmatprep.subr.mxu0 0.0
    %446 = vmatpush1.msra.mxu0 0.0
    %447 = vmatprep.subr.mxu0 0.0
    %448 = vmatpush1.msra.mxu0 0.0
    %449 = vmatprep.subr.mxu0 0.0
    %450 = vmatpush1.msra.mxu0 0.0
    %451 = vmatprep.subr.mxu0 0.0
    %452 = vmatpush1.msra.mxu0 0.0
    %453 = vmatprep.subr.mxu0 0.0
    %454 = vmatpush1.msra.mxu0 0.0
    %455 = vmatprep.subr.mxu0 0.0
    %456 = vmatpush1.msra.mxu0 0.0
    %457 = vmatprep.subr.mxu0 0.0
    %458 = vmatpush1.msra.mxu0 0.0
    %459 = vmatprep.subr.mxu0 0.0
    %460 = vmatpush1.msra.mxu0 0.0
    %461 = vmatprep.subr.mxu0 0.0
    %462 = vmatpush1.msra.mxu0 0.0
    %463 = vmatprep.subr.mxu0 0.0
    %464 = vmatpush1.msra.mxu0 0.0
    %465 = vmatprep.subr.mxu0 0.0
    %466 = vmatpush1.msra.mxu0 0.0
    %467 = vmatprep.subr.mxu0 0.0
    %468 = vmatpush1.msra.mxu0 0.0
    %469 = vmatprep.subr.mxu0 0.0
    %470 = vmatpush1.msra.mxu0 0.0
    %471 = vmatprep.subr.mxu0 0.0
    %472 = vmatpush1.msra.mxu0 0.0
    %473 = vmatprep.subr.mxu0 0.0
    %474 = vmatpush1.msra.mxu0 0.0
    %475 = vmatprep.subr.mxu0 0.0
    %476 = vmatpush1.msra.mxu0 0.0
    %477 = vmatprep.subr.mxu0 0.0
    %478 = vmatpush1.msra.mxu0 0.0
    %479 = vmatprep.subr.mxu0 0.0
    %480 = vmatpush1.msra.mxu0 0.0
    %481 = vmatprep.subr.mxu0 0.0
    %482 = vmatpush1.msra.mxu0 0.0
    %483 = vmatprep.subr.mxu0 0.0
    %484 = vmatpush1.msra.mxu0 0.0
    %485 = vmatprep.subr.mxu0 0.0
    %486 = vmatpush1.msra.mxu0 0.0
    %487 = vmatprep.subr.mxu0 0.0
    %488 = vmatpush1.msra.mxu0 0.0
    %489 = vmatprep.subr.mxu0 0.0
    %490 = vmatpush1.msra.mxu0 0.0
    %491 = vmatprep.subr.mxu0 0.0
    %492 = vmatpush1.msra.mxu0 0.0
    %493 = vmatprep.subr.mxu0 0.0
    %494 = vmatpush1.msra.mxu0 0.0
    %495 = vmatprep.mubr.f32.mxu0 0.0
    %496 = vmatmul.mubr.f32.gmra.mrb[0].mxu0 %v429
    %v497 = vpop.f32.mrb[0].mxu0
    %v498 = vadd.f32 0.0, %v497
    %v499 = vpop.f32.mrb[0].mxu0
    %500 = vdwg.mxu0
    %v501 = vadd.f32 %v427, %v498
    %v502 = vtanh.pop %v501
    %s503 = scalar_lea.vmem [#allocation3], 24
    %504 = vst.msk [vmem:[%s503] sm:$0xff] %vm177, %v502
    %s505 = scalar_lea.vmem [#allocation2], 32
    %v506 = vld [vmem:[%s505] sm:$0xff]
    %v508 = vsel %vm177, %v502, 0
    %510 = vmatprep.subr.mxu0 0.0
    %511 = vmatpush1.msra.mxu0 %v186
    %512 = vmatprep.subr.mxu0 0.0
    %513 = vmatpush1.msra.mxu0 %v187
    %514 = vmatprep.subr.mxu0 0.0
    %515 = vmatpush1.msra.mxu0 %v188
    %516 = vmatprep.subr.mxu0 0.0
    %517 = vmatpush1.msra.mxu0 %v189
    %518 = vmatprep.subr.mxu0 0.0
    %519 = vmatpush1.msra.mxu0 0.0
    %520 = vmatprep.subr.mxu0 0.0
    %521 = vmatpush1.msra.mxu0 0.0
    %522 = vmatprep.subr.mxu0 0.0
    %523 = vmatpush1.msra.mxu0 0.0
    %524 = vmatprep.subr.mxu0 0.0
    %525 = vmatpush1.msra.mxu0 0.0
    %526 = vmatprep.subr.mxu0 0.0
    %527 = vmatpush1.msra.mxu0 0.0
    %528 = vmatprep.subr.mxu0 0.0
    %529 = vmatpush1.msra.mxu0 0.0
    %530 = vmatprep.subr.mxu0 0.0
    %531 = vmatpush1.msra.mxu0 0.0
    %532 = vmatprep.subr.mxu0 0.0
    %533 = vmatpush1.msra.mxu0 0.0
    %534 = vmatprep.subr.mxu0 0.0
    %535 = vmatpush1.msra.mxu0 0.0
    %536 = vmatprep.subr.mxu0 0.0
    %537 = vmatpush1.msra.mxu0 0.0
    %538 = vmatprep.subr.mxu0 0.0
    %539 = vmatpush1.msra.mxu0 0.0
    %540 = vmatprep.subr.mxu0 0.0
    %541 = vmatpush1.msra.mxu0 0.0
    %542 = vmatprep.subr.mxu0 0.0
    %543 = vmatpush1.msra.mxu0 0.0
    %544 = vmatprep.subr.mxu0 0.0
    %545 = vmatpush1.msra.mxu0 0.0
    %546 = vmatprep.subr.mxu0 0.0
    %547 = vmatpush1.msra.mxu0 0.0
    %548 = vmatprep.subr.mxu0 0.0
    %549 = vmatpush1.msra.mxu0 0.0
    %550 = vmatprep.subr.mxu0 0.0
    %551 = vmatpush1.msra.mxu0 0.0
    %552 = vmatprep.subr.mxu0 0.0
    %553 = vmatpush1.msra.mxu0 0.0
    %554 = vmatprep.subr.mxu0 0.0
    %555 = vmatpush1.msra.mxu0 0.0
    %556 = vmatprep.subr.mxu0 0.0
    %557 = vmatpush1.msra.mxu0 0.0
    %558 = vmatprep.subr.mxu0 0.0
    %559 = vmatpush1.msra.mxu0 0.0
    %560 = vmatprep.subr.mxu0 0.0
    %561 = vmatpush1.msra.mxu0 0.0
    %562 = vmatprep.subr.mxu0 0.0
    %563 = vmatpush1.msra.mxu0 0.0
    %564 = vmatprep.subr.mxu0 0.0
    %565 = vmatpush1.msra.mxu0 0.0
    %566 = vmatprep.subr.mxu0 0.0
    %567 = vmatpush1.msra.mxu0 0.0
    %568 = vmatprep.subr.mxu0 0.0
    %569 = vmatpush1.msra.mxu0 0.0
    %570 = vmatprep.subr.mxu0 0.0
    %571 = vmatpush1.msra.mxu0 0.0
    %572 = vmatprep.subr.mxu0 0.0
    %573 = vmatpush1.msra.mxu0 0.0
    %574 = vmatprep.mubr.f32.mxu0 0.0
    %575 = vmatmul.mubr.f32.gmra.mrb[0].mxu0 %v508
    %v576 = vpop.f32.mrb[0].mxu0
    %v577 = vadd.f32 0.0, %v576
    %v578 = vpop.f32.mrb[0].mxu0
    %579 = vdwg.mxu0
    %v580 = vadd.f32 %v506, %v577
    %v581 = vtanh.pop %v580
    %s582 = scalar_lea.vmem [#allocation3], 32
    %583 = vst.msk [vmem:[%s582] sm:$0xff] %vm177, %v581
    %s584 = scalar_lea.vmem [#allocation2], 40
    %v585 = vld [vmem:[%s584] sm:$0xff]
    %v587 = vsel %vm177, %v581, 0
    %589 = vmatprep.subr.mxu0 0.0
    %590 = vmatpush1.msra.mxu0 %v186
    %591 = vmatprep.subr.mxu0 0.0
    %592 = vmatpush1.msra.mxu0 %v187
    %593 = vmatprep.subr.mxu0 0.0
    %594 = vmatpush1.msra.mxu0 %v188
    %595 = vmatprep.subr.mxu0 0.0
    %596 = vmatpush1.msra.mxu0 %v189
    %597 = vmatprep.subr.mxu0 0.0
    %598 = vmatpush1.msra.mxu0 0.0
    %599 = vmatprep.subr.mxu0 0.0
    %600 = vmatpush1.msra.mxu0 0.0
    %601 = vmatprep.subr.mxu0 0.0
    %602 = vmatpush1.msra.mxu0 0.0
    %603 = vmatprep.subr.mxu0 0.0
    %604 = vmatpush1.msra.mxu0 0.0
    %605 = vmatprep.subr.mxu0 0.0
    %606 = vmatpush1.msra.mxu0 0.0
    %607 = vmatprep.subr.mxu0 0.0
    %608 = vmatpush1.msra.mxu0 0.0
    %609 = vmatprep.subr.mxu0 0.0
    %610 = vmatpush1.msra.mxu0 0.0
    %611 = vmatprep.subr.mxu0 0.0
    %612 = vmatpush1.msra.mxu0 0.0
    %613 = vmatprep.subr.mxu0 0.0
    %614 = vmatpush1.msra.mxu0 0.0
    %615 = vmatprep.subr.mxu0 0.0
    %616 = vmatpush1.msra.mxu0 0.0
    %617 = vmatprep.subr.mxu0 0.0
    %618 = vmatpush1.msra.mxu0 0.0
    %619 = vmatprep.subr.mxu0 0.0
    %620 = vmatpush1.msra.mxu0 0.0
    %621 = vmatprep.subr.mxu0 0.0
    %622 = vmatpush1.msra.mxu0 0.0
    %623 = vmatprep.subr.mxu0 0.0
    %624 = vmatpush1.msra.mxu0 0.0
    %625 = vmatprep.subr.mxu0 0.0
    %626 = vmatpush1.msra.mxu0 0.0
    %627 = vmatprep.subr.mxu0 0.0
    %628 = vmatpush1.msra.mxu0 0.0
    %629 = vmatprep.subr.mxu0 0.0
    %630 = vmatpush1.msra.mxu0 0.0
    %631 = vmatprep.subr.mxu0 0.0
    %632 = vmatpush1.msra.mxu0 0.0
    %633 = vmatprep.subr.mxu0 0.0
    %634 = vmatpush1.msra.mxu0 0.0
    %635 = vmatprep.subr.mxu0 0.0
    %636 = vmatpush1.msra.mxu0 0.0
    %637 = vmatprep.subr.mxu0 0.0
    %638 = vmatpush1.msra.mxu0 0.0
    %639 = vmatprep.subr.mxu0 0.0
    %640 = vmatpush1.msra.mxu0 0.0
    %641 = vmatprep.subr.mxu0 0.0
    %642 = vmatpush1.msra.mxu0 0.0
    %643 = vmatprep.subr.mxu0 0.0
    %644 = vmatpush1.msra.mxu0 0.0
    %645 = vmatprep.subr.mxu0 0.0
    %646 = vmatpush1.msra.mxu0 0.0
    %647 = vmatprep.subr.mxu0 0.0
    %648 = vmatpush1.msra.mxu0 0.0
    %649 = vmatprep.subr.mxu0 0.0
    %650 = vmatpush1.msra.mxu0 0.0
    %651 = vmatprep.subr.mxu0 0.0
    %652 = vmatpush1.msra.mxu0 0.0
    %653 = vmatprep.mubr.f32.mxu0 0.0
    %654 = vmatmul.mubr.f32.gmra.mrb[0].mxu0 %v587
    %v655 = vpop.f32.mrb[0].mxu0
    %v656 = vadd.f32 0.0, %v655
    %v657 = vpop.f32.mrb[0].mxu0
    %658 = vdwg.mxu0
    %v659 = vadd.f32 %v585, %v656
    %v660 = vtanh.pop %v659
    %s661 = scalar_lea.vmem [#allocation3], 40
    %662 = vst.msk [vmem:[%s661] sm:$0xff] %vm177, %v660
    %s663 = scalar_lea.vmem [#allocation2], 48
    %v664 = vld [vmem:[%s663] sm:$0xff]
    %v666 = vsel %vm177, %v660, 0
    %668 = vmatprep.subr.mxu0 0.0
    %669 = vmatpush1.msra.mxu0 %v186
    %670 = vmatprep.subr.mxu0 0.0
    %671 = vmatpush1.msra.mxu0 %v187
    %672 = vmatprep.subr.mxu0 0.0
    %673 = vmatpush1.msra.mxu0 %v188
    %674 = vmatprep.subr.mxu0 0.0
    %675 = vmatpush1.msra.mxu0 %v189
    %676 = vmatprep.subr.mxu0 0.0
    %677 = vmatpush1.msra.mxu0 0.0
    %678 = vmatprep.subr.mxu0 0.0
    %679 = vmatpush1.msra.mxu0 0.0
    %680 = vmatprep.subr.mxu0 0.0
    %681 = vmatpush1.msra.mxu0 0.0
    %682 = vmatprep.subr.mxu0 0.0
    %683 = vmatpush1.msra.mxu0 0.0
    %684 = vmatprep.subr.mxu0 0.0
    %685 = vmatpush1.msra.mxu0 0.0
    %686 = vmatprep.subr.mxu0 0.0
    %687 = vmatpush1.msra.mxu0 0.0
    %688 = vmatprep.subr.mxu0 0.0
    %689 = vmatpush1.msra.mxu0 0.0
    %690 = vmatprep.subr.mxu0 0.0
    %691 = vmatpush1.msra.mxu0 0.0
    %692 = vmatprep.subr.mxu0 0.0
    %693 = vmatpush1.msra.mxu0 0.0
    %694 = vmatprep.subr.mxu0 0.0
    %695 = vmatpush1.msra.mxu0 0.0
    %696 = vmatprep.subr.mxu0 0.0
    %697 = vmatpush1.msra.mxu0 0.0
    %698 = vmatprep.subr.mxu0 0.0
    %699 = vmatpush1.msra.mxu0 0.0
    %700 = vmatprep.subr.mxu0 0.0
    %701 = vmatpush1.msra.mxu0 0.0
    %702 = vmatprep.subr.mxu0 0.0
    %703 = vmatpush1.msra.mxu0 0.0
    %704 = vmatprep.subr.mxu0 0.0
    %705 = vmatpush1.msra.mxu0 0.0
    %706 = vmatprep.subr.mxu0 0.0
    %707 = vmatpush1.msra.mxu0 0.0
    %708 = vmatprep.subr.mxu0 0.0
    %709 = vmatpush1.msra.mxu0 0.0
    %710 = vmatprep.subr.mxu0 0.0
    %711 = vmatpush1.msra.mxu0 0.0
    %712 = vmatprep.subr.mxu0 0.0
    %713 = vmatpush1.msra.mxu0 0.0
    %714 = vmatprep.subr.mxu0 0.0
    %715 = vmatpush1.msra.mxu0 0.0
    %716 = vmatprep.subr.mxu0 0.0
    %717 = vmatpush1.msra.mxu0 0.0
    %718 = vmatprep.subr.mxu0 0.0
    %719 = vmatpush1.msra.mxu0 0.0
    %720 = vmatprep.subr.mxu0 0.0
    %721 = vmatpush1.msra.mxu0 0.0
    %722 = vmatprep.subr.mxu0 0.0
    %723 = vmatpush1.msra.mxu0 0.0
    %724 = vmatprep.subr.mxu0 0.0
    %725 = vmatpush1.msra.mxu0 0.0
    %726 = vmatprep.subr.mxu0 0.0
    %727 = vmatpush1.msra.mxu0 0.0
    %728 = vmatprep.subr.mxu0 0.0
    %729 = vmatpush1.msra.mxu0 0.0
    %730 = vmatprep.subr.mxu0 0.0
    %731 = vmatpush1.msra.mxu0 0.0
    %732 = vmatprep.mubr.f32.mxu0 0.0
    %733 = vmatmul.mubr.f32.gmra.mrb[0].mxu0 %v666
    %v734 = vpop.f32.mrb[0].mxu0
    %v735 = vadd.f32 0.0, %v734
    %v736 = vpop.f32.mrb[0].mxu0
    %737 = vdwg.mxu0
    %v738 = vadd.f32 %v664, %v735
    %v739 = vtanh.pop %v738
    %s740 = scalar_lea.vmem [#allocation3], 48
    %741 = vst.msk [vmem:[%s740] sm:$0xff] %vm177, %v739
    %s742 = scalar_lea.vmem [#allocation2], 56
    %v743 = vld [vmem:[%s742] sm:$0xff]
    %v745 = vsel %vm177, %v739, 0
    %747 = vmatprep.subr.mxu0 0.0
    %748 = vmatpush1.msra.mxu0 %v186
    %749 = vmatprep.subr.mxu0 0.0
    %750 = vmatpush1.msra.mxu0 %v187
    %751 = vmatprep.subr.mxu0 0.0
    %752 = vmatpush1.msra.mxu0 %v188
    %753 = vmatprep.subr.mxu0 0.0
    %754 = vmatpush1.msra.mxu0 %v189
    %755 = vmatprep.subr.mxu0 0.0
    %756 = vmatpush1.msra.mxu0 0.0
    %757 = vmatprep.subr.mxu0 0.0
    %758 = vmatpush1.msra.mxu0 0.0
    %759 = vmatprep.subr.mxu0 0.0
    %760 = vmatpush1.msra.mxu0 0.0
    %761 = vmatprep.subr.mxu0 0.0
    %762 = vmatpush1.msra.mxu0 0.0
    %763 = vmatprep.subr.mxu0 0.0
    %764 = vmatpush1.msra.mxu0 0.0
    %765 = vmatprep.subr.mxu0 0.0
    %766 = vmatpush1.msra.mxu0 0.0
    %767 = vmatprep.subr.mxu0 0.0
    %768 = vmatpush1.msra.mxu0 0.0
    %769 = vmatprep.subr.mxu0 0.0
    %770 = vmatpush1.msra.mxu0 0.0
    %771 = vmatprep.subr.mxu0 0.0
    %772 = vmatpush1.msra.mxu0 0.0
    %773 = vmatprep.subr.mxu0 0.0
    %774 = vmatpush1.msra.mxu0 0.0
    %775 = vmatprep.subr.mxu0 0.0
    %776 = vmatpush1.msra.mxu0 0.0
    %777 = vmatprep.subr.mxu0 0.0
    %778 = vmatpush1.msra.mxu0 0.0
    %779 = vmatprep.subr.mxu0 0.0
    %780 = vmatpush1.msra.mxu0 0.0
    %781 = vmatprep.subr.mxu0 0.0
    %782 = vmatpush1.msra.mxu0 0.0
    %783 = vmatprep.subr.mxu0 0.0
    %784 = vmatpush1.msra.mxu0 0.0
    %785 = vmatprep.subr.mxu0 0.0
    %786 = vmatpush1.msra.mxu0 0.0
    %787 = vmatprep.subr.mxu0 0.0
    %788 = vmatpush1.msra.mxu0 0.0
    %789 = vmatprep.subr.mxu0 0.0
    %790 = vmatpush1.msra.mxu0 0.0
    %791 = vmatprep.subr.mxu0 0.0
    %792 = vmatpush1.msra.mxu0 0.0
    %793 = vmatprep.subr.mxu0 0.0
    %794 = vmatpush1.msra.mxu0 0.0
    %795 = vmatprep.subr.mxu0 0.0
    %796 = vmatpush1.msra.mxu0 0.0
    %797 = vmatprep.subr.mxu0 0.0
    %798 = vmatpush1.msra.mxu0 0.0
    %799 = vmatprep.subr.mxu0 0.0
    %800 = vmatpush1.msra.mxu0 0.0
    %801 = vmatprep.subr.mxu0 0.0
    %802 = vmatpush1.msra.mxu0 0.0
    %803 = vmatprep.subr.mxu0 0.0
    %804 = vmatpush1.msra.mxu0 0.0
    %805 = vmatprep.subr.mxu0 0.0
    %806 = vmatpush1.msra.mxu0 0.0
    %807 = vmatprep.subr.mxu0 0.0
    %808 = vmatpush1.msra.mxu0 0.0
    %809 = vmatprep.subr.mxu0 0.0
    %810 = vmatpush1.msra.mxu0 0.0
    %811 = vmatprep.mubr.f32.mxu0 0.0
    %812 = vmatmul.mubr.f32.gmra.mrb[0].mxu0 %v745
    %v813 = vpop.f32.mrb[0].mxu0
    %v814 = vadd.f32 0.0, %v813
    %v815 = vpop.f32.mrb[0].mxu0
    %816 = vdwg.mxu0
    %v817 = vadd.f32 %v743, %v814
    %v818 = vtanh.pop %v817
    %s819 = scalar_lea.vmem [#allocation3], 56
    %820 = vst.msk [vmem:[%s819] sm:$0xff] %vm177, %v818
    %v821 = vld [vmem:[#allocation3] sm:$0xff]
    %v822 = vld [vmem:[#allocation3 + $0x8] sm:$0xff]
    %v823 = vld [vmem:[#allocation3 + $0x10] sm:$0xff]
    %v824 = vld [vmem:[#allocation3 + $0x18] sm:$0xff]
    %v825 = vld [vmem:[#allocation3 + $0x20] sm:$0xff]
    %v826 = vld [vmem:[#allocation3 + $0x28] sm:$0xff]
    %v827 = vld [vmem:[#allocation3 + $0x30] sm:$0xff]
    %v828 = vld [vmem:[#allocation3 + $0x38] sm:$0xff]
    %v829 = vld [vmem:[%s4] sm:$0xff]
    %v830 = vld [vmem:[%s4 + $0x8] sm:$0xff]
    %v831 = vld [vmem:[%s4 + $0x10] sm:$0xff]
    %v832 = vld [vmem:[%s4 + $0x18] sm:$0xff]
    %v833 = vld [vmem:[%s5] sm:$0x1]
    %v835 = vlaneseq
    %v836 = vshrl.u32 %v835, 7
    %v837 = vsub.s32 0, %v836
    %v838 = vrot.slane %v833, %v837
    %v841 = vsel %vm177, %v821, 0
    %v844 = vsel %vm177, %v822, 0
    %v847 = vsel %vm177, %v823, 0
    %v850 = vsel %vm177, %v824, 0
    %v853 = vsel %vm177, %v825, 0
    %v856 = vsel %vm177, %v826, 0
    %v859 = vsel %vm177, %v827, 0
    %v862 = vsel %vm177, %v828, 0
    %864 = vmatprep.subr.mxu0 0.0
    %865 = vmatpush1.msra.mxu0 %v829
    %866 = vmatprep.subr.mxu0 0.0
    %867 = vmatpush1.msra.mxu0 %v830
    %868 = vmatprep.subr.mxu0 0.0
    %869 = vmatpush1.msra.mxu0 %v831
    %870 = vmatprep.subr.mxu0 0.0
    %871 = vmatpush1.msra.mxu0 %v832
    %872 = vmatprep.subr.mxu0 0.0
    %873 = vmatpush1.msra.mxu0 0.0
    %874 = vmatprep.subr.mxu0 0.0
    %875 = vmatpush1.msra.mxu0 0.0
    %876 = vmatprep.subr.mxu0 0.0
    %877 = vmatpush1.msra.mxu0 0.0
    %878 = vmatprep.subr.mxu0 0.0
    %879 = vmatpush1.msra.mxu0 0.0
    %880 = vmatprep.subr.mxu0 0.0
    %881 = vmatpush1.msra.mxu0 0.0
    %882 = vmatprep.subr.mxu0 0.0
    %883 = vmatpush1.msra.mxu0 0.0
    %884 = vmatprep.subr.mxu0 0.0
    %885 = vmatpush1.msra.mxu0 0.0
    %886 = vmatprep.subr.mxu0 0.0
    %887 = vmatpush1.msra.mxu0 0.0
    %888 = vmatprep.subr.mxu0 0.0
    %889 = vmatpush1.msra.mxu0 0.0
    %890 = vmatprep.subr.mxu0 0.0
    %891 = vmatpush1.msra.mxu0 0.0
    %892 = vmatprep.subr.mxu0 0.0
    %893 = vmatpush1.msra.mxu0 0.0
    %894 = vmatprep.subr.mxu0 0.0
    %895 = vmatpush1.msra.mxu0 0.0
    %896 = vmatprep.subr.mxu0 0.0
    %897 = vmatpush1.msra.mxu0 0.0
    %898 = vmatprep.subr.mxu0 0.0
    %899 = vmatpush1.msra.mxu0 0.0
    %900 = vmatprep.subr.mxu0 0.0
    %901 = vmatpush1.msra.mxu0 0.0
    %902 = vmatprep.subr.mxu0 0.0
    %903 = vmatpush1.msra.mxu0 0.0
    %904 = vmatprep.subr.mxu0 0.0
    %905 = vmatpush1.msra.mxu0 0.0
    %906 = vmatprep.subr.mxu0 0.0
    %907 = vmatpush1.msra.mxu0 0.0
    %908 = vmatprep.subr.mxu0 0.0
    %909 = vmatpush1.msra.mxu0 0.0
    %910 = vmatprep.subr.mxu0 0.0
    %911 = vmatpush1.msra.mxu0 0.0
    %912 = vmatprep.subr.mxu0 0.0
    %913 = vmatpush1.msra.mxu0 0.0
    %914 = vmatprep.subr.mxu0 0.0
    %915 = vmatpush1.msra.mxu0 0.0
    %916 = vmatprep.subr.mxu0 0.0
    %917 = vmatpush1.msra.mxu0 0.0
    %918 = vmatprep.subr.mxu0 0.0
    %919 = vmatpush1.msra.mxu0 0.0
    %920 = vmatprep.subr.mxu0 0.0
    %921 = vmatpush1.msra.mxu0 0.0
    %922 = vmatprep.subr.mxu0 0.0
    %923 = vmatpush1.msra.mxu0 0.0
    %924 = vmatprep.subr.mxu0 0.0
    %925 = vmatpush1.msra.mxu0 0.0
    %926 = vmatprep.subr.mxu0 0.0
    %927 = vmatpush1.msra.mxu0 0.0
    %928 = vmatprep.mubr.f32.mxu0 0.0
    %929 = vmatmul.mubr.f32.gmra.mrb[0].mxu0 %v841
    %v930 = vpop.f32.mrb[0].mxu0
    %v931 = vadd.f32 %v838, %v930
    %v932 = vpop.f32.mrb[0].mxu0
    %933 = vmatprep.mubr.f32.mxu0 0.0
    %934 = vmatmul.mubr.f32.gmra.mrb[0].mxu0 %v844
    %v935 = vpop.f32.mrb[0].mxu0
    %v936 = vadd.f32 %v838, %v935
    %v937 = vpop.f32.mrb[0].mxu0
    %938 = vmatprep.mubr.f32.mxu0 0.0
    %939 = vmatmul.mubr.f32.gmra.mrb[0].mxu0 %v847
    %v940 = vpop.f32.mrb[0].mxu0
    %v941 = vadd.f32 %v838, %v940
    %v942 = vpop.f32.mrb[0].mxu0
    %943 = vmatprep.mubr.f32.mxu0 0.0
    %944 = vmatmul.mubr.f32.gmra.mrb[0].mxu0 %v850
    %v945 = vpop.f32.mrb[0].mxu0
    %v946 = vadd.f32 %v838, %v945
    %v947 = vpop.f32.mrb[0].mxu0
    %948 = vmatprep.mubr.f32.mxu0 0.0
    %949 = vmatmul.mubr.f32.gmra.mrb[0].mxu0 %v853
    %v950 = vpop.f32.mrb[0].mxu0
    %v951 = vadd.f32 %v838, %v950
    %v952 = vpop.f32.mrb[0].mxu0
    %953 = vmatprep.mubr.f32.mxu0 0.0
    %954 = vmatmul.mubr.f32.gmra.mrb[0].mxu0 %v856
    %v955 = vpop.f32.mrb[0].mxu0
    %v956 = vadd.f32 %v838, %v955
    %v957 = vpop.f32.mrb[0].mxu0
    %958 = vmatprep.mubr.f32.mxu0 0.0
    %959 = vmatmul.mubr.f32.gmra.mrb[0].mxu0 %v859
    %v960 = vpop.f32.mrb[0].mxu0
    %v961 = vadd.f32 %v838, %v960
    %v962 = vpop.f32.mrb[0].mxu0
    %963 = vmatprep.mubr.f32.mxu0 0.0
    %964 = vmatmul.mubr.f32.gmra.mrb[0].mxu0 %v862
    %v965 = vpop.f32.mrb[0].mxu0
    %v966 = vadd.f32 %v838, %v965
    %v967 = vpop.f32.mrb[0].mxu0
    %968 = vdwg.mxu0
    %969 = vst [vmem:[#allocation4] sm:$0xff] %v931
    %970 = vst [vmem:[#allocation4 + $0x8] sm:$0xff] %v936
    %971 = vst [vmem:[#allocation4 + $0x10] sm:$0xff] %v941
    %972 = vst [vmem:[#allocation4 + $0x18] sm:$0xff] %v946
    %973 = vst [vmem:[#allocation4 + $0x20] sm:$0xff] %v951
    %974 = vst [vmem:[#allocation4 + $0x28] sm:$0xff] %v956
    %975 = vst [vmem:[#allocation4 + $0x30] sm:$0xff] %v961
    %976 = vst [vmem:[#allocation4 + $0x38] sm:$0xff] %v966
    %977 = vst.msk [vmem:[#allocation6] sm:$0xff] %vm177, %v818
    // Predicated region
    $region30: #{tpu_custom_call.1} parent=1 // pred_check
      _
    $region31: #{tpu_custom_call.1} parent=1 // pred_check_branch
      %979 = sbr.rel (0) target = $region33
    $region32: #{tpu_custom_call.1} parent=1 // pred_region
      %s981 = ssub.s32 1024, 1024
      %982 = vsyncadd [#allocation5], %s981
      %s983 = sshll.u32 [#allocation4], 4
      %s984 = int_to_ptr.vmem [resolvable:$true] %s983
      %989 = dma.vmem_to_hbm [thread:$0]  %s984, 1024, %s7, [#allocation5], 128, 128, 8
    $region33: #{tpu_custom_call.1} parent=1 // pred_fallthru
      _
    // Predicated region
    $region34: #{tpu_custom_call.1} parent=1 // pred_check
      _
    $region35: #{tpu_custom_call.1} parent=1 // pred_check_branch
      %991 = sbr.rel (0) target = $region37
    $region36: #{tpu_custom_call.1} parent=1 // pred_region
      %s993 = ssub.s32 128, 128
      %994 = vsyncadd [#allocation7], %s993
      %s996 = sshll.u32 [#allocation6], 4
      %s997 = int_to_ptr.vmem [resolvable:$true] %s996
      %999 = dma.vmem_to_hbm [thread:$0]  %s997, 128, %s8, [#allocation7]
    $region37: #{tpu_custom_call.1} parent=1 // pred_fallthru
      _
    // Predicated region
    $region38: #{tpu_custom_call.1} parent=1 // pred_check
      _
    $region39: #{tpu_custom_call.1} parent=1 // pred_check_branch
      %1001 = sbr.rel (0) target = $region41
    $region40: #{tpu_custom_call.1} parent=1 // pred_region
      %1002 = dma.done [#allocation5], 1024
    $region41: #{tpu_custom_call.1} parent=1 // pred_fallthru
      _
    // Predicated region
    $region42: #{tpu_custom_call.1} parent=1 // pred_check
      _
    $region43: #{tpu_custom_call.1} parent=1 // pred_check_branch
      %1004 = sbr.rel (0) target = $region45
    $region44: #{tpu_custom_call.1} parent=1 // pred_region
      %1005 = dma.done [#allocation7], 128
    $region45: #{tpu_custom_call.1} parent=1 // pred_fallthru
      _
    %1006 = vsyncpa [#allocation5], 1
    %1007 = vsyncpa [#allocation7], 1

</llo_original>
